<compile_context>
chip_gen: v7x
topology: tpu7x:2x2x1
jax: 0.10.0
libtpu: 0.0.40
codegen_flags: <defaults>
</compile_context>

<pallas_src>
import functools

import jax
import jax.numpy as jnp
from jax.experimental import pallas as pl
from jax.experimental.pallas import tpu as pltpu


# --------------------------------------------------------------------------
# Kernels
# --------------------------------------------------------------------------

def _collapsed_kernel(x_ref, w_ref, b_ref, o_ref, *, B, C, O):
    """Single-grid-step kernel for small (overhead-bound) problems.

    x_ref: (B*C, L) VMEM -- x1 with (B, C) rows flattened (free reshape)
    w_ref: (O, C)   SMEM -- weight pre-scaled by 1/C
    b_ref: (O,)     SMEM -- bias pre-scaled by 1/C
    o_ref: (B*O, L) VMEM -- channels-first output, rows flattened
    """
    x = x_ref[...]                                        # one load of the block
    # Hoist the O*C weight scalars / O bias scalars (read SMEM exactly once).
    w = [[w_ref[o, c] for c in range(C)] for o in range(O)]
    bias = [b_ref[o] for o in range(O)]
    for b in range(B):                                    # static unroll (tiny B)
        for o in range(O):                                # static unroll (O == 2)
            acc = x[b * C + 0:b * C + 1, :] * w[o][0]
            for c in range(1, C):                         # static unroll (C == 2)
                acc = acc + x[b * C + c:b * C + c + 1, :] * w[o][c]
            r = b * O + o
            o_ref[r:r + 1, :] = (acc + bias[o]).astype(o_ref.dtype)


def _tiled_kernel(x_ref, w_ref, b_ref, o_ref):
    """Tiled kernel for large L (dense (8,128) vreg work).

    x_ref: (C, lt_s, 128) VMEM -- L split into dense (sublane, lane) tiles
    w_ref: (O, C) SMEM; b_ref: (O,) SMEM  (pre-scaled by 1/C)
    o_ref: (O, lt_s, 128) VMEM -- lane-dense, unmasked stores
    """
    C = x_ref.shape[0]
    O = o_ref.shape[0]
    xs = [x_ref[c] for c in range(C)]                     # each (lt_s, 128), loaded once
    w = [[w_ref[o, c] for c in range(C)] for o in range(O)]
    bias = [b_ref[o] for o in range(O)]
    for o in range(O):
        acc = xs[0] * w[o][0]
        for c in range(1, C):
            acc = acc + xs[c] * w[o][c]
        o_ref[o] = (acc + bias[o]).astype(o_ref.dtype)


# --------------------------------------------------------------------------
# Tiling helpers
# --------------------------------------------------------------------------

_COLLAPSED_BYTES_LIMIT = 2 * 1024 * 1024   # collapse to one grid step below this
_TILE_BYTES_BUDGET = 4 * 1024 * 1024       # per-step (in+out) tile bytes (~256K lanes)


def _pick_tile_s(S, cap_s):
    """Largest tile (in 128-lane rows) that divides S, is a multiple of 8,
    and stays under the VMEM-derived cap."""
    if S <= cap_s:
        return S
    cap = max(8, cap_s)
    best = 8
    d = 8
    while d <= cap:
        if S % d == 0:
            best = d
        d += 8
    return best


# --------------------------------------------------------------------------
# Wrapper
# --------------------------------------------------------------------------

def model_forward(x1, weight, bias, *, transpose_output=True):
    """x1: (B, C, L); weight: (O, C); bias: (O,).

    Returns permute(x1) @ W.T + b, divided by C -- shape (B, L, O) to match the
    PyTorch module (set transpose_output=False to keep the kernel's native
    channels-first (B, O, L) layout and skip the extra HBM transpose pass).
    """
    B, C, L = x1.shape
    O = weight.shape[0]
    itemsize = jnp.dtype(x1.dtype).itemsize

    # Fold `/ float(C)` into the tiny (O, C) weight and (O,) bias (exact).
    inv_c = 1.0 / float(C)
    w_s = weight.astype(jnp.float32) * inv_c
    b_s = bias.astype(jnp.float32) * inv_c

    streamed = B * (C + O) * L * itemsize
    cost = pl.CostEstimate(
        flops=2 * B * L * O * C,
        transcendentals=0,
        bytes_accessed=streamed + (w_s.size + b_s.size) * 4,
    )

    if streamed <= _COLLAPSED_BYTES_LIMIT and (B * O * C) <= 256:
        # ---- Small problem: one grid step, whole-array blocks. ----
        x2d = x1.reshape(B * C, L)                        # free row-major merge
        out2d = pl.pallas_call(
            functools.partial(_collapsed_kernel, B=B, C=C, O=O),
            out_shape=jax.ShapeDtypeStruct((B * O, L), x1.dtype),
            grid=(1,),
            in_specs=[
                pl.BlockSpec((B * C, L), lambda i: (0, 0)),
                pl.BlockSpec(memory_space=pltpu.MemorySpace.SMEM),
                pl.BlockSpec(memory_space=pltpu.MemorySpace.SMEM),
            ],
            out_specs=pl.BlockSpec((B * O, L), lambda i: (0, 0)),
            compiler_params=pltpu.CompilerParams(
                dimension_semantics=("arbitrary",)),
            cost_estimate=cost,
        )(x2d, w_s, b_s)
        out_bol = out2d.reshape(B, O, L)
    else:
        # ---- Large L: dense (lt_s, 128) tiles, big DMA-budgeted steps. ----
        # Pad L so it splits into whole (8, 128) vreg tiles (sliced off below).
        Lp = ((L + 1023) // 1024) * 1024
        xp = x1 if Lp == L else jnp.pad(x1, ((0, 0), (0, 0), (0, Lp - L)))
        S = Lp // 128
        x4d = xp.reshape(B, C, S, 128)                    # free split of last dim

        cap_s = max(8, _TILE_BYTES_BUDGET // ((C + O) * 128 * itemsize))
        lt_s = _pick_tile_s(S, cap_s)
        if B == 1 and S == lt_s and S % 16 == 0:
            lt_s = S // 2                                 # give both v7x TCs a block

        grid = (B, S // lt_s)
        out4d = pl.pallas_call(
            _tiled_kernel,
            out_shape=jax.ShapeDtypeStruct((B, O, S, 128), x1.dtype),
            grid=grid,
            in_specs=[
                pl.BlockSpec((None, C, lt_s, 128), lambda b, l: (b, 0, l, 0)),
                pl.BlockSpec(memory_space=pltpu.MemorySpace.SMEM),
                pl.BlockSpec(memory_space=pltpu.MemorySpace.SMEM),
            ],
            out_specs=pl.BlockSpec((None, O, lt_s, 128),
                                   lambda b, l: (b, 0, l, 0)),
            compiler_params=pltpu.CompilerParams(
                dimension_semantics=("parallel", "parallel"),
                vmem_limit_bytes=32 * 1024 * 1024),
            cost_estimate=cost,
        )(x4d, w_s, b_s)
        out_bol = out4d.reshape(B, O, Lp)
        if Lp != L:
            out_bol = out_bol[:, :, :L]

    if not transpose_output:
        return out_bol                                    # channels-first (B, O, L)
    # Present the PyTorch layout (B, L, O). Consumers that accept channels-first
    # can pass transpose_output=False and skip this extra HBM pass.
    return jnp.transpose(out_bol, (0, 2, 1))


if __name__ == "__main__":
    key = jax.random.PRNGKey(0)
    k1, k2, k3, k4 = jax.random.split(key, 4)

    # Linear(2, 2) fixes C = O = 2 (matches the PyTorch module).
    B, C, O = 2, 2, 2
    weight = jax.random.normal(k2, (O, C), dtype=jnp.float32) * 0.5
    bias = jax.random.normal(k3, (O,), dtype=jnp.float32) * 0.1

    def ref_fn(x):
        # Pure-JAX reference: (permute(x) @ W^T + b) / C
        return (jnp.transpose(x, (0, 2, 1)) @ weight.T + bias) / float(x.shape[1])

    # Small / overhead-bound case -> single-grid-step collapsed path.
    L_small = 384
    x_small = jax.random.normal(k1, (B, C, L_small), dtype=jnp.float32)
    out_small = model_forward(x_small, weight, bias)
    jax.block_until_ready(out_small)
    assert out_small.shape == (B, L_small, O)
    assert jnp.allclose(out_small, ref_fn(x_small), atol=1e-5, rtol=1e-5)

    # Larger L -> tiled path with dense (lt_s, 128) vreg blocks (grid (2, 2)).
    L_big = 384 * 1024
    x_big = jax.random.normal(k4, (B, C, L_big), dtype=jnp.float32)
    out_big = model_forward(x_big, weight, bias)
    jax.block_until_ready(out_big)
    assert out_big.shape == (B, L_big, O)
    assert jnp.allclose(out_big, ref_fn(x_big), atol=1e-5, rtol=1e-5)

    # NOTE: torch.max(v2, dim=-1)[0] in the original module is dead code
    # (its result never reaches the return value), so it is elided here.
    print("KERNEL_OK")
</pallas_src>

<mosaic_0001>
module attributes {stable_mosaic.version = 11 : i64} {
  func.func @_collapsed_kernel(%arg0: i32, %arg1: memref<4x384xf32, #tpu.memory_space<vmem>>, %arg2: memref<2x2xf32, #tpu.memory_space<smem>>, %arg3: memref<2xf32, #tpu.memory_space<smem>>, %arg4: memref<4x384xf32, #tpu.memory_space<vmem>>) attributes {dimension_semantics = [#tpu.dimension_semantics<arbitrary>], iteration_bounds = array<i64: 1>, scalar_prefetch = 0 : i64, scratch_operands = 0 : i64, tpu.core_type = #tpu.core_type<tc>, window_params = [{pipeline_mode = #tpu.pipeline_mode<synchronous>, transform_indices = @transform_0, window_bounds = array<i64: 4, 384>}, {transform_indices = @transform_1, window_bounds = array<i64: 2, 2>}, {transform_indices = @transform_2, window_bounds = array<i64: 2>}, {pipeline_mode = #tpu.pipeline_mode<synchronous>, transform_indices = @transform_3, window_bounds = array<i64: 4, 384>}]} {
    %c0 = arith.constant 0 : index
    %c0_0 = arith.constant 0 : index
    %0 = vector.load %arg1[%c0, %c0_0] : memref<4x384xf32, #tpu.memory_space<vmem>>, vector<4x384xf32>
    %c0_1 = arith.constant 0 : index
    %c0_2 = arith.constant 0 : index
    %1 = memref.load %arg2[%c0_1, %c0_2] : memref<2x2xf32, #tpu.memory_space<smem>>
    %c0_3 = arith.constant 0 : index
    %c1 = arith.constant 1 : index
    %2 = memref.load %arg2[%c0_3, %c1] : memref<2x2xf32, #tpu.memory_space<smem>>
    %c1_4 = arith.constant 1 : index
    %c0_5 = arith.constant 0 : index
    %3 = memref.load %arg2[%c1_4, %c0_5] : memref<2x2xf32, #tpu.memory_space<smem>>
    %c1_6 = arith.constant 1 : index
    %c1_7 = arith.constant 1 : index
    %4 = memref.load %arg2[%c1_6, %c1_7] : memref<2x2xf32, #tpu.memory_space<smem>>
    %c0_8 = arith.constant 0 : index
    %5 = memref.load %arg3[%c0_8] : memref<2xf32, #tpu.memory_space<smem>>
    %c1_9 = arith.constant 1 : index
    %6 = memref.load %arg3[%c1_9] : memref<2xf32, #tpu.memory_space<smem>>
    %7 = vector.extract_strided_slice %0 {offsets = [0, 0], sizes = [1, 384], strides = [1, 1]} : vector<4x384xf32> to vector<1x384xf32>
    %8 = vector.broadcast %1 : f32 to vector<1x384xf32>
    %9 = arith.mulf %7, %8 : vector<1x384xf32>
    %10 = vector.extract_strided_slice %0 {offsets = [1, 0], sizes = [1, 384], strides = [1, 1]} : vector<4x384xf32> to vector<1x384xf32>
    %11 = vector.broadcast %2 : f32 to vector<1x384xf32>
    %12 = arith.mulf %10, %11 : vector<1x384xf32>
    %13 = arith.addf %9, %12 : vector<1x384xf32>
    %14 = vector.broadcast %5 : f32 to vector<1x384xf32>
    %15 = arith.addf %13, %14 : vector<1x384xf32>
    %c0_10 = arith.constant 0 : index
    %c0_11 = arith.constant 0 : index
    %16 = vector.load %arg4[%c0_10, %c0_11] : memref<4x384xf32, #tpu.memory_space<vmem>>, vector<1x384xf32>
    tpu.vector_store %arg4[%c0_10, %c0_11], %15 {strides = array<i32>} : memref<4x384xf32, #tpu.memory_space<vmem>>, vector<1x384xf32>,
    %17 = vector.extract_strided_slice %0 {offsets = [0, 0], sizes = [1, 384], strides = [1, 1]} : vector<4x384xf32> to vector<1x384xf32>
    %18 = vector.broadcast %3 : f32 to vector<1x384xf32>
    %19 = arith.mulf %17, %18 : vector<1x384xf32>
    %20 = vector.extract_strided_slice %0 {offsets = [1, 0], sizes = [1, 384], strides = [1, 1]} : vector<4x384xf32> to vector<1x384xf32>
    %21 = vector.broadcast %4 : f32 to vector<1x384xf32>
    %22 = arith.mulf %20, %21 : vector<1x384xf32>
    %23 = arith.addf %19, %22 : vector<1x384xf32>
    %24 = vector.broadcast %6 : f32 to vector<1x384xf32>
    %25 = arith.addf %23, %24 : vector<1x384xf32>
    %c1_12 = arith.constant 1 : index
    %c0_13 = arith.constant 0 : index
    %26 = vector.load %arg4[%c1_12, %c0_13] : memref<4x384xf32, #tpu.memory_space<vmem>>, vector<1x384xf32>
    tpu.vector_store %arg4[%c1_12, %c0_13], %25 {strides = array<i32>} : memref<4x384xf32, #tpu.memory_space<vmem>>, vector<1x384xf32>,
    %27 = vector.extract_strided_slice %0 {offsets = [2, 0], sizes = [1, 384], strides = [1, 1]} : vector<4x384xf32> to vector<1x384xf32>
    %28 = vector.broadcast %1 : f32 to vector<1x384xf32>
    %29 = arith.mulf %27, %28 : vector<1x384xf32>
    %30 = vector.extract_strided_slice %0 {offsets = [3, 0], sizes = [1, 384], strides = [1, 1]} : vector<4x384xf32> to vector<1x384xf32>
    %31 = vector.broadcast %2 : f32 to vector<1x384xf32>
    %32 = arith.mulf %30, %31 : vector<1x384xf32>
    %33 = arith.addf %29, %32 : vector<1x384xf32>
    %34 = vector.broadcast %5 : f32 to vector<1x384xf32>
    %35 = arith.addf %33, %34 : vector<1x384xf32>
    %c2 = arith.constant 2 : index
    %c0_14 = arith.constant 0 : index
    %36 = vector.load %arg4[%c2, %c0_14] : memref<4x384xf32, #tpu.memory_space<vmem>>, vector<1x384xf32>
    tpu.vector_store %arg4[%c2, %c0_14], %35 {strides = array<i32>} : memref<4x384xf32, #tpu.memory_space<vmem>>, vector<1x384xf32>,
    %37 = vector.extract_strided_slice %0 {offsets = [2, 0], sizes = [1, 384], strides = [1, 1]} : vector<4x384xf32> to vector<1x384xf32>
    %38 = vector.broadcast %3 : f32 to vector<1x384xf32>
    %39 = arith.mulf %37, %38 : vector<1x384xf32>
    %40 = vector.extract_strided_slice %0 {offsets = [3, 0], sizes = [1, 384], strides = [1, 1]} : vector<4x384xf32> to vector<1x384xf32>
    %41 = vector.broadcast %4 : f32 to vector<1x384xf32>
    %42 = arith.mulf %40, %41 : vector<1x384xf32>
    %43 = arith.addf %39, %42 : vector<1x384xf32>
    %44 = vector.broadcast %6 : f32 to vector<1x384xf32>
    %45 = arith.addf %43, %44 : vector<1x384xf32>
    %c3 = arith.constant 3 : index
    %c0_15 = arith.constant 0 : index
    %46 = vector.load %arg4[%c3, %c0_15] : memref<4x384xf32, #tpu.memory_space<vmem>>, vector<1x384xf32>
    tpu.vector_store %arg4[%c3, %c0_15], %45 {strides = array<i32>} : memref<4x384xf32, #tpu.memory_space<vmem>>, vector<1x384xf32>,
    return
  }
  func.func @transform_0(%arg0: i32) -> (i32, i32) {
    %c0_i32 = arith.constant 0 : i32
    %c0_i32_0 = arith.constant 0 : i32
    %c0_i32_1 = arith.constant 0 : i32
    return %c0_i32, %c0_i32_0 : i32, i32
  }
  func.func @transform_1(%arg0: i32) -> (i32, i32) {
    %c0_i32 = arith.constant 0 : i32
    %c0_i32_0 = arith.constant 0 : i32
    %c0_i32_1 = arith.constant 0 : i32
    return %c0_i32, %c0_i32_0 : i32, i32
  }
  func.func @transform_2(%arg0: i32) -> i32 {
    %c0_i32 = arith.constant 0 : i32
    %c0_i32_0 = arith.constant 0 : i32
    return %c0_i32 : i32
  }
  func.func @transform_3(%arg0: i32) -> (i32, i32) {
    %c0_i32 = arith.constant 0 : i32
    %c0_i32_0 = arith.constant 0 : i32
    %c0_i32_1 = arith.constant 0 : i32
    return %c0_i32, %c0_i32_0 : i32, i32
  }
}

</mosaic_0001>

<llo_original>
// kernel: tpu_custom_call.1
$region0: #{tpu_custom_call.1}
  #allocation0 [shape = 'u32[]', space=smem, size = 0x4, offset = 0x4, fixed_abs, tag = 'smem constant byte address 0x4 - core index']
  #allocation1 [shape = 'u32[144,128]{1,0:T(1,128)}', space=vmem, size = 0x12000, scoped, tag = 'internal scratch']
  %s0 = inlined_call_operand.hbm [shape: f32[4,384], index: 0, kind: input, shape index: {}]
  %s1 = inlined_call_operand.vmem [shape: f32[2,2], index: 1, kind: input, shape index: {}]
  %s2 = inlined_call_operand.vmem [shape: f32[2], index: 2, kind: input, shape index: {}]
  %s3 = inlined_call_operand.hbm [shape: f32[4,384], index: 3, kind: output, shape index: {}]
  %s4 = sld [smem:[#allocation0]]
  $region34: #{tpu_custom_call.1} parent=0
    _
  %s6 = ssub.s32 1, %s4
  %s7 = scalar_select 0, %s6, %s4
  $region1: #{tpu_custom_call.1} parent=0
    #allocation2 [shape = 'u8[6144]{0}', space=vmem, size = 0x1800, scoped, tag = 'input window, operand 0, single buffered']
    #allocation3 [shape = 's32[1]{0}', space=sflag, size = 0x4, scoped, tag = 'scoped memory for tpu_custom_call.1']
    #allocation4 [shape = 's32[1]{0}', space=sflag, size = 0x4, scoped, tag = 'scoped memory for tpu_custom_call.1']
    #allocation5 [shape = 's32[1]{0}', space=sflag, size = 0x4, scoped, tag = 'scoped memory for tpu_custom_call.1']
    #allocation6 [shape = 'u8[1024]{0}', space=smem, size = 0x400, scoped, tag = 'input window, operand 1, single buffered']
    #allocation7 [shape = 'u8[512]{0}', space=smem, size = 0x200, scoped, tag = 'input window, operand 2, single buffered']
    #allocation8 [shape = 's32[1]{0}', space=sflag, size = 0x4, scoped, tag = 'scoped memory for tpu_custom_call.1']
    #allocation9 [shape = 'u8[6144]{0}', space=vmem, size = 0x1800, scoped, tag = 'output window, operand 0, single buffered']
    %8 = vsyncpa [#allocation3], 0
    %9 = vsyncpa [#allocation5], 0
    %10 = vsyncpa [#allocation8], 0
    %11 = vsyncpa [#allocation4], 0
    // Predicated region
    $region2: #{tpu_custom_call.1} parent=1 // pred_check
      _
    $region3: #{tpu_custom_call.1} parent=1 // pred_check_branch
      %13 = sbr.rel (0) target = $region5
    $region4: #{tpu_custom_call.1} parent=1 // pred_region
      %s15 = ssub.s32 192, 192
      %16 = vsyncadd [#allocation3], %s15
      %s18 = sshll.u32 [#allocation2], 4
      %s19 = int_to_ptr.vmem [resolvable:$true] %s18
      %21 = dma.hbm_to_vmem [thread:$0]  %s0, 192, %s19, [#allocation3]
    $region5: #{tpu_custom_call.1} parent=1 // pred_fallthru
      _
    // Predicated region
    $region6: #{tpu_custom_call.1} parent=1 // pred_check
      _
    $region7: #{tpu_custom_call.1} parent=1 // pred_check_branch
      %23 = sbr.rel (0) target = $region9
    $region8: #{tpu_custom_call.1} parent=1 // pred_region
      %s25 = ssub.s32 32, 32
      %26 = vsyncadd [#allocation5], %s25
      %s28 = sshll.u32 %s1, 4
      %s29 = int_to_ptr.vmem [resolvable:$true] %s28
      %31 = dma.vmem_to_smem %s29, 32, [#allocation6], [#allocation5]
    $region9: #{tpu_custom_call.1} parent=1 // pred_fallthru
      _
    // Predicated region
    $region10: #{tpu_custom_call.1} parent=1 // pred_check
      _
    $region11: #{tpu_custom_call.1} parent=1 // pred_check_branch
      %33 = sbr.rel (0) target = $region13
    $region12: #{tpu_custom_call.1} parent=1 // pred_region
      %s35 = ssub.s32 16, 16
      %36 = vsyncadd [#allocation8], %s35
      %s38 = sshll.u32 %s2, 4
      %s39 = int_to_ptr.vmem [resolvable:$true] %s38
      %41 = dma.vmem_to_smem %s39, 16, [#allocation7], [#allocation8]
    $region13: #{tpu_custom_call.1} parent=1 // pred_fallthru
      _
    // Predicated region
    $region14: #{tpu_custom_call.1} parent=1 // pred_check
      _
    $region15: #{tpu_custom_call.1} parent=1 // pred_check_branch
      %43 = sbr.rel (0) target = $region17
    $region16: #{tpu_custom_call.1} parent=1 // pred_region
      %44 = dma.done [#allocation3], 192
    $region17: #{tpu_custom_call.1} parent=1 // pred_fallthru
      _
    // Predicated region
    $region18: #{tpu_custom_call.1} parent=1 // pred_check
      _
    $region19: #{tpu_custom_call.1} parent=1 // pred_check_branch
      %46 = sbr.rel (0) target = $region21
    $region20: #{tpu_custom_call.1} parent=1 // pred_region
      %47 = dma.done [#allocation5], 32
    $region21: #{tpu_custom_call.1} parent=1 // pred_fallthru
      _
    // Predicated region
    $region22: #{tpu_custom_call.1} parent=1 // pred_check
      _
    $region23: #{tpu_custom_call.1} parent=1 // pred_check_branch
      %49 = sbr.rel (0) target = $region25
    $region24: #{tpu_custom_call.1} parent=1 // pred_region
      %50 = dma.done [#allocation8], 16
    $region25: #{tpu_custom_call.1} parent=1 // pred_fallthru
      _
    %51 = sfence
    %v52 = vld [vmem:[#allocation2] sm:$0xff]
    %v53 = vld [vmem:[#allocation2 + $0x8] sm:$0xf]
    %s54 = sld [smem:[#allocation6]]
    %s55 = sld [smem:[#allocation6 + $0x1]]
    %s56 = sld [smem:[#allocation6 + $0x80]]
    %s57 = sld [smem:[#allocation6 + $0x81]]
    %s58 = sld [smem:[#allocation7]]
    %s59 = sld [smem:[#allocation7 + $0x1]]
    %v60 = vstv %s54
    %v61 = vmul.f32 %v52, %v60
    %v62 = vmul.f32 %v53, %v60
    %v63 = vstv %s55
    %v64 = vmul.f32 %v52, %v63
    %v65 = vmul.f32 %v53, %v63
    %v68 = vrot.slane %v64, 5
    %v69 = vrot.slane %v68, 4
    %v70 = vrot.slane %v65, 5
    %v71 = vrot.slane %v70, 4
    %v74 = vadd.f32 %v61, %v69
    %v75 = vadd.f32 %v62, %v71
    %v76 = vstv %s58
    %v77 = vadd.f32 %v74, %v76
    %v78 = vadd.f32 %v75, %v76
    %v82 = vunpack.c.l.s4 1966171168
    %v83 = vunpack.c.0.s8 %v82
    %v84 = vlaneseq
    %v85 = vshrl.u32 %v84, 7
    %v86 = vsub.s32 %v83, %v85
    %v87 = vrot.slane %v77, %v86
    %v89 = vunpack.c.l.s4 1966171168
    %v90 = vunpack.c.0.s8 %v89
    %v91 = vlaneseq
    %v92 = vshrl.u32 %v91, 7
    %v93 = vsub.s32 %v90, %v92
    %v94 = vrot.slane %v78, %v93
    %v95 = vcombine.low %v87, %v94
    %v97 = vunpack.c.l.s4 1966171168
    %v98 = vunpack.c.0.s8 %v97
    %v99 = vlaneseq
    %v100 = vshrl.u32 %v99, 7
    %v101 = vsub.s32 %v98, %v100
    %v102 = vrot.slane %v95, %v101
    %v104 = vlaneseq
    %vm105 = vcmp.ge.s32.totalorder %v104, 0
    %vm106 = vcmp.lt.s32.totalorder %v104, 384
    %vm107 = vmand %vm105, %vm106
    %108 = vst.msk [vmem:[#allocation9] ss:$4 sm:$0x7] %vm107, %v102
    %v109 = vstv %s56
    %v110 = vmul.f32 %v52, %v109
    %v111 = vmul.f32 %v53, %v109
    %v112 = vstv %s57
    %v113 = vmul.f32 %v52, %v112
    %v114 = vmul.f32 %v53, %v112
    %v117 = vrot.slane %v113, 5
    %v118 = vrot.slane %v117, 4
    %v119 = vrot.slane %v114, 5
    %v120 = vrot.slane %v119, 4
    %v123 = vadd.f32 %v110, %v118
    %v124 = vadd.f32 %v111, %v120
    %v125 = vstv %s59
    %v126 = vadd.f32 %v123, %v125
    %v127 = vadd.f32 %v124, %v125
    %v131 = vunpack.c.l.s4 1966171168
    %v132 = vunpack.c.0.s8 %v131
    %v133 = vlaneseq
    %v134 = vshrl.u32 %v133, 7
    %v135 = vsub.s32 %v132, %v134
    %v136 = vrot.slane %v126, %v135
    %v138 = vunpack.c.l.s4 1966171168
    %v139 = vunpack.c.0.s8 %v138
    %v140 = vlaneseq
    %v141 = vshrl.u32 %v140, 7
    %v142 = vsub.s32 %v139, %v141
    %v143 = vrot.slane %v127, %v142
    %v144 = vcombine.low %v136, %v143
    %v146 = vunpack.c.l.s4 1966171168
    %v147 = vunpack.c.0.s8 %v146
    %v148 = vlaneseq
    %v149 = vshrl.u32 %v148, 7
    %v150 = vsub.s32 %v147, %v149
    %v151 = vrot.slane %v144, %v150
    %s153 = scalar_lea.vmem [#allocation9], 1
    %154 = vst.msk [vmem:[%s153] ss:$4 sm:$0x7] %vm107, %v151
    %v155 = vcombine.high %v102, %v102
    %s157 = scalar_lea.vmem [#allocation9], 2
    %158 = vst.msk [vmem:[%s157] ss:$4 sm:$0x7] %vm107, %v155
    %v159 = vcombine.high %v151, %v151
    %s161 = scalar_lea.vmem [#allocation9], 3
    %162 = vst.msk [vmem:[%s161] ss:$4 sm:$0x7] %vm107, %v159
    // Predicated region
    $region26: #{tpu_custom_call.1} parent=1 // pred_check
      _
    $region27: #{tpu_custom_call.1} parent=1 // pred_check_branch
      %164 = sbr.rel (0) target = $region29
    $region28: #{tpu_custom_call.1} parent=1 // pred_region
      %s166 = ssub.s32 192, 192
      %167 = vsyncadd [#allocation4], %s166
      %s169 = sshll.u32 [#allocation9], 4
      %s170 = int_to_ptr.vmem [resolvable:$true] %s169
      %172 = dma.vmem_to_hbm [thread:$0]  %s170, 192, %s3, [#allocation4]
    $region29: #{tpu_custom_call.1} parent=1 // pred_fallthru
      _
    // Predicated region
    $region30: #{tpu_custom_call.1} parent=1 // pred_check
      _
    $region31: #{tpu_custom_call.1} parent=1 // pred_check_branch
      %174 = sbr.rel (0) target = $region33
    $region32: #{tpu_custom_call.1} parent=1 // pred_region
      %175 = dma.done [#allocation4], 192
    $region33: #{tpu_custom_call.1} parent=1 // pred_fallthru
      _
    %176 = vsyncpa [#allocation3], 1
    %177 = vsyncpa [#allocation4], 1
    %178 = vsyncpa [#allocation5], 1
    %179 = vsyncpa [#allocation8], 1

</llo_original>
